<compile_context>
chip_gen: v6e
topology: v6e:2x2x1
jax: 0.10.0
libtpu: 0.0.40
codegen_flags: <defaults>
</compile_context>

<pallas_src>
import jax
import jax.numpy as jnp
from jax.experimental import pallas as pl
from jax.experimental.pallas import tpu as pltpu

HIDDEN = 20                     # fixed by the PyTorch module: nn.Linear(in_dim, 20)

_DEFAULT_BLOCK_B = 65536        # lane-tile cap (see VMEM accounting in the wrapper)
_MIN_PALLAS_BATCH = 2048        # below this, a standalone pallas_call is pure overhead
_MIN_GRID_STEPS = 8             # >= 4 pipelined steps per TC on v7x's 2 TensorCores
_VMEM_LIMIT_BYTES = 48 * 1024 * 1024


def _round_up(x, m):
    return (x + m - 1) // m * m


def _round_down(x, m):
    return x // m * m


def dqn_kernel(xt_ref, w1_ref, b1_ref, w2_ref, b2_ref, qt_ref):
    # Hidden layer (transposed): h^T = relu(W1 @ x^T + b1)   -> (hidden, tb)
    h = jnp.dot(w1_ref[...], xt_ref[...], preferred_element_type=jnp.float32)
    h = jnp.maximum(h + b1_ref[...], 0.0)               # VPU, lane-dense
    # Output layer (transposed): q^T = W2 @ h^T + b2         -> (out_dim, tb)
    q = jnp.dot(w2_ref[...], h, preferred_element_type=jnp.float32) + b2_ref[...]
    qt_ref[...] = q.astype(qt_ref.dtype)                 # lane-dense (unmasked) store
    # TODO(synk): in the training loop, fuse the action-max / Q(s,a)-gather
    # epilogue here (a 3-sublane XLU reduce) and emit a (1, tb) output instead
    # of all Q-values -- cuts write traffic 3x, but changes the module's return
    # value, so it is not done in this forward-compatible kernel.


def _pick_batch_tile(B, block_b):
    """Lane-tile: multiple of 128, <= block_b, aiming for >= _MIN_GRID_STEPS steps.

    Never falls back to tiny 128-lane tiles for large batches; by construction
    tb <= ~B/8 + 128, so pad-to-multiple-of-tb waste is bounded by ~12.5%.
    """
    block_b = max(128, _round_down(block_b, 128))
    tb = _round_down(pl.cdiv(B, _MIN_GRID_STEPS), 128)
    return max(128, min(block_b, tb))


def deep_q_network_forward_t(xt, w1, b1_col, w2, b2_col, *, block_b=_DEFAULT_BLOCK_B):
    """Copy-free (feature-major) forward:  q^T = W2 @ relu(W1 @ x^T + b1) + b2.

    xt:     (in_dim, B)        float32   (batch on the lane axis)
    w1:     (hidden, in_dim)   float32   (native nn.Linear.weight layout)
    b1_col: (hidden, 1)        float32
    w2:     (out_dim, hidden)  float32
    b2_col: (out_dim, 1)       float32
    returns (out_dim, B)       float32   (feature-major Q-values)

    This is the recommended hot-path entry point: no wrapper relayout copies.
    """
    in_dim, B = xt.shape
    hidden = w1.shape[0]
    out_dim = w2.shape[0]

    if B < _MIN_PALLAS_BATCH:
        # Action-selection-sized batches: let XLA fuse it (no kernel dispatch).
        h = jnp.maximum(w1 @ xt + b1_col, 0.0)
        return w2 @ h + b2_col

    tb = _pick_batch_tile(B, block_b)
    b_pad = _round_up(B, tb)
    if b_pad != B:
        # Zero-pad the lane (batch) axis up to a tile multiple; padded columns
        # compute harmless garbage that is sliced off below.
        xt = jnp.pad(xt, ((0, 0), (0, b_pad - B)))
    grid = (b_pad // tb,)

    # Per-step VMEM (with (8,128) sublane padding, per the perf review):
    #   x^T block  (4,tb)->(8,tb)  : 32*tb B, double-buffered -> 64*tb
    #   q^T block  (3,tb)->(8,tb)  : 32*tb B, double-buffered -> 64*tb
    #   h^T tile  (20,tb)->(24,tb) : 96*tb B (+ up to ~128*tb elementwise temps)
    #   weights/biases             : ~16 KiB, VMEM-resident
    # => worst case ~352*tb B ~= 22 MiB at the tb=65536 cap.  vmem_limit_bytes
    # is raised to 48 MiB (>=2x headroom; below v7x's 64 MiB physical VMEM, and
    # above v5e's 16 MiB scoped default which would otherwise reject big tiles).
    # TODO(synk): if a bundle dump ever shows exposed DMA issue latency on v6e,
    # add pipeline_mode=pl.Buffered(3) on the x^T spec (plenty of VMEM slack).
    qt = pl.pallas_call(
        dqn_kernel,
        out_shape=jax.ShapeDtypeStruct((out_dim, b_pad), jnp.float32),
        grid_spec=pltpu.PrefetchScalarGridSpec(
            num_scalar_prefetch=0,
            grid=grid,
            in_specs=[
                pl.BlockSpec((in_dim, tb), lambda i: (0, i)),       # x^T: streamed
                pl.BlockSpec((hidden, in_dim), lambda i: (0, 0)),   # W1: resident
                pl.BlockSpec((hidden, 1), lambda i: (0, 0)),        # b1: resident
                pl.BlockSpec((out_dim, hidden), lambda i: (0, 0)),  # W2: resident
                pl.BlockSpec((out_dim, 1), lambda i: (0, 0)),       # b2: resident
            ],
            out_specs=pl.BlockSpec((out_dim, tb), lambda i: (0, i)),
        ),
        compiler_params=pltpu.CompilerParams(
            # Batch tiles are fully independent: shard across both TensorCores
            # on v7x; harmless no-op on v5e/v6e (1 TC).
            dimension_semantics=("parallel",),
            vmem_limit_bytes=_VMEM_LIMIT_BYTES,
        ),
    )(xt, w1, b1_col, w2, b2_col)

    return qt[:, :B] if b_pad != B else qt


def deep_q_network_forward(x, w1, b1_col, w2, b2_col, *, block_b=_DEFAULT_BLOCK_B):
    """PyTorch-compatible interface: x (B, in_dim) -> Q-values (B, out_dim).

    NOTE: the x.T / q^T.T here are pure layout copies (~2x the kernel's own HBM
    traffic); hot-path callers should keep observations feature-major and use
    deep_q_network_forward_t directly, or fuse this forward into its consumer.
    TODO(synk): an on-chip relayout of natural-layout x ((tb, 4) input blocks)
    was considered but rejected -- a 4-wide lane dim pads 32x in VMEM, which
    would force the batch tile back down; the feature-major API is the fix.
    """
    B = x.shape[0]
    if B < _MIN_PALLAS_BATCH:
        h = jnp.maximum(x @ w1.T + b1_col.reshape(1, -1), 0.0)
        return h @ w2.T + b2_col.reshape(1, -1)
    return deep_q_network_forward_t(x.T, w1, b1_col, w2, b2_col, block_b=block_b).T


def init_params(key, in_dim, out_dim, hidden=HIDDEN):
    """nn.Linear-style U(-1/sqrt(fan_in), 1/sqrt(fan_in)) init.

    Returned exactly in the layout the kernel consumes (weights in native
    (out, in) layout, biases as column vectors) -- no per-call parameter
    reshapes/transposes on the hot path.
    """
    k1, k2, k3, k4 = jax.random.split(key, 4)
    bound1 = 1.0 / (in_dim ** 0.5)
    bound2 = 1.0 / (hidden ** 0.5)
    w1 = jax.random.uniform(k1, (hidden, in_dim), jnp.float32, -bound1, bound1)
    b1 = jax.random.uniform(k2, (hidden, 1), jnp.float32, -bound1, bound1)
    w2 = jax.random.uniform(k3, (out_dim, hidden), jnp.float32, -bound2, bound2)
    b2 = jax.random.uniform(k4, (out_dim, 1), jnp.float32, -bound2, bound2)
    return w1, b1, w2, b2


def _reference(x, w1, b1, w2, b2):
    # Plain-JAX reference with PyTorch nn.Linear semantics.
    h = jnp.maximum(x @ w1.T + b1.reshape(1, -1), 0.0)
    return h @ w2.T + b2.reshape(1, -1)


if __name__ == "__main__":
    key = jax.random.PRNGKey(0)
    k_x1, k_x2, k_x3, k_p = jax.random.split(key, 4)

    in_dim, out_dim = 4, 3                              # CartPole-style DQN
    w1, b1, w2, b2 = init_params(k_p, in_dim, out_dim)

    # (1) Replay-style batch through the zero-copy feature-major path
    #     (tb = 512 lanes, 8 pipelined grid steps).
    B1 = 4096
    x1 = jax.random.normal(k_x1, (B1, in_dim), jnp.float32)
    xt1 = x1.T   # demo-only; a real caller keeps observations feature-major
    qt1 = jax.block_until_ready(deep_q_network_forward_t(xt1, w1, b1, w2, b2))
    assert qt1.shape == (out_dim, B1)
    assert jnp.allclose(qt1.T, _reference(x1, w1, b1, w2, b2), atol=1e-5, rtol=1e-5)

    # (2) PyTorch-interface wrapper on a batch that is NOT a multiple of the
    #     tile (exercises pad + slice; tb = 256, grid = 10 steps).
    B2 = 2500
    x2 = jax.random.normal(k_x2, (B2, in_dim), jnp.float32)
    q2 = jax.block_until_ready(deep_q_network_forward(x2, w1, b1, w2, b2))
    assert q2.shape == (B2, out_dim)
    assert jnp.allclose(q2, _reference(x2, w1, b1, w2, b2), atol=1e-5, rtol=1e-5)

    # (3) Tiny action-selection batch: gated off the Pallas path entirely
    #     (a single-step grid would be pure dispatch overhead).
    B3 = 8
    x3 = jax.random.normal(k_x3, (B3, in_dim), jnp.float32)
    q3 = jax.block_until_ready(deep_q_network_forward(x3, w1, b1, w2, b2))
    assert q3.shape == (B3, out_dim)
    assert jnp.allclose(q3, _reference(x3, w1, b1, w2, b2), atol=1e-5, rtol=1e-5)

    print("KERNEL_OK")
</pallas_src>

<mosaic_0001>
module attributes {stable_mosaic.version = 11 : i64} {
  func.func @dqn_kernel(%arg0: i32, %arg1: memref<4x512xf32, #tpu.memory_space<vmem>>, %arg2: memref<20x4xf32, #tpu.memory_space<vmem>>, %arg3: memref<20x1xf32, #tpu.memory_space<vmem>>, %arg4: memref<3x20xf32, #tpu.memory_space<vmem>>, %arg5: memref<3x1xf32, #tpu.memory_space<vmem>>, %arg6: memref<3x512xf32, #tpu.memory_space<vmem>>) attributes {dimension_semantics = [#tpu.dimension_semantics<parallel>], iteration_bounds = array<i64: 8>, scalar_prefetch = 0 : i64, scratch_operands = 0 : i64, tpu.core_type = #tpu.core_type<tc>, window_params = [{transform_indices = @transform_0, window_bounds = array<i64: 4, 512>}, {pipeline_mode = #tpu.pipeline_mode<synchronous>, transform_indices = @transform_1, window_bounds = array<i64: 20, 4>}, {pipeline_mode = #tpu.pipeline_mode<synchronous>, transform_indices = @transform_2, window_bounds = array<i64: 20, 1>}, {pipeline_mode = #tpu.pipeline_mode<synchronous>, transform_indices = @transform_3, window_bounds = array<i64: 3, 20>}, {pipeline_mode = #tpu.pipeline_mode<synchronous>, transform_indices = @transform_4, window_bounds = array<i64: 3, 1>}, {transform_indices = @transform_5, window_bounds = array<i64: 3, 512>}]} {
    %c0 = arith.constant 0 : index
    %c0_0 = arith.constant 0 : index
    %0 = vector.load %arg2[%c0, %c0_0] : memref<20x4xf32, #tpu.memory_space<vmem>>, vector<20x4xf32>
    %c0_1 = arith.constant 0 : index
    %c0_2 = arith.constant 0 : index
    %1 = vector.load %arg1[%c0_1, %c0_2] : memref<4x512xf32, #tpu.memory_space<vmem>>, vector<4x512xf32>
    %cst = arith.constant dense<0.000000e+00> : vector<20x512xf32>
    %2 = tpu.matmul %0, %1, %cst {dimension_numbers = #tpu.dot_dimension_numbers<[1], [0], [0], [1], [0, 0, 1, 1], [], []>} : vector<20x4xf32>, vector<4x512xf32>, vector<20x512xf32> -> vector<20x512xf32>
    %c0_3 = arith.constant 0 : index
    %c0_4 = arith.constant 0 : index
    %3 = vector.load %arg3[%c0_3, %c0_4] : memref<20x1xf32, #tpu.memory_space<vmem>>, vector<20x1xf32>
    %4 = vector.broadcast %3 : vector<20x1xf32> to vector<20x512xf32>
    %5 = arith.addf %2, %4 : vector<20x512xf32>
    %cst_5 = arith.constant 0.000000e+00 : f32
    %6 = vector.broadcast %cst_5 : f32 to vector<20x512xf32>
    %7 = arith.maximumf %5, %6 : vector<20x512xf32>
    %c0_6 = arith.constant 0 : index
    %c0_7 = arith.constant 0 : index
    %8 = vector.load %arg4[%c0_6, %c0_7] : memref<3x20xf32, #tpu.memory_space<vmem>>, vector<3x20xf32>
    %cst_8 = arith.constant dense<0.000000e+00> : vector<3x512xf32>
    %9 = tpu.matmul %8, %7, %cst_8 {dimension_numbers = #tpu.dot_dimension_numbers<[1], [0], [0], [1], [0, 0, 1, 1], [], []>} : vector<3x20xf32>, vector<20x512xf32>, vector<3x512xf32> -> vector<3x512xf32>
    %c0_9 = arith.constant 0 : index
    %c0_10 = arith.constant 0 : index
    %10 = vector.load %arg5[%c0_9, %c0_10] : memref<3x1xf32, #tpu.memory_space<vmem>>, vector<3x1xf32>
    %11 = vector.broadcast %10 : vector<3x1xf32> to vector<3x512xf32>
    %12 = arith.addf %9, %11 : vector<3x512xf32>
    %c0_11 = arith.constant 0 : index
    %c0_12 = arith.constant 0 : index
    %13 = vector.load %arg6[%c0_11, %c0_12] : memref<3x512xf32, #tpu.memory_space<vmem>>, vector<3x512xf32>
    tpu.vector_store %arg6[%c0_11, %c0_12], %12 {strides = array<i32>} : memref<3x512xf32, #tpu.memory_space<vmem>>, vector<3x512xf32>,
    return
  }
  func.func @transform_0(%arg0: i32) -> (i32, i32) {
    %c0_i32 = arith.constant 0 : i32
    %c0_i32_0 = arith.constant 0 : i32
    return %c0_i32, %arg0 : i32, i32
  }
  func.func @transform_1(%arg0: i32) -> (i32, i32) {
    %c0_i32 = arith.constant 0 : i32
    %c0_i32_0 = arith.constant 0 : i32
    %c0_i32_1 = arith.constant 0 : i32
    return %c0_i32, %c0_i32_0 : i32, i32
  }
  func.func @transform_2(%arg0: i32) -> (i32, i32) {
    %c0_i32 = arith.constant 0 : i32
    %c0_i32_0 = arith.constant 0 : i32
    %c0_i32_1 = arith.constant 0 : i32
    return %c0_i32, %c0_i32_0 : i32, i32
  }
  func.func @transform_3(%arg0: i32) -> (i32, i32) {
    %c0_i32 = arith.constant 0 : i32
    %c0_i32_0 = arith.constant 0 : i32
    %c0_i32_1 = arith.constant 0 : i32
    return %c0_i32, %c0_i32_0 : i32, i32
  }
  func.func @transform_4(%arg0: i32) -> (i32, i32) {
    %c0_i32 = arith.constant 0 : i32
    %c0_i32_0 = arith.constant 0 : i32
    %c0_i32_1 = arith.constant 0 : i32
    return %c0_i32, %c0_i32_0 : i32, i32
  }
  func.func @transform_5(%arg0: i32) -> (i32, i32) {
    %c0_i32 = arith.constant 0 : i32
    %c0_i32_0 = arith.constant 0 : i32
    return %c0_i32, %arg0 : i32, i32
  }
}

</mosaic_0001>

<llo_original>
// kernel: tpu_custom_call.1
$region0: #{tpu_custom_call.1}
  #allocation0 [shape = 'u32[]', space=smem, size = 0x4, offset = 0x4, fixed_abs, tag = 'smem constant byte address 0x4 - core index']
  #allocation1 [shape = 'u32[144,128]{1,0:T(1,128)}', space=vmem, size = 0x12000, scoped, tag = 'internal scratch']
  %s0 = inlined_call_operand.hbm [shape: f32[4,4096], index: 0, kind: input, shape index: {}]
  %s1 = inlined_call_operand.vmem [shape: f32[20,4], index: 1, kind: input, shape index: {}]
  %s2 = inlined_call_operand.vmem [shape: f32[20,1], index: 2, kind: input, shape index: {}]
  %s3 = inlined_call_operand.vmem [shape: f32[3,20], index: 3, kind: input, shape index: {}]
  %s4 = inlined_call_operand.vmem [shape: f32[3,1], index: 4, kind: input, shape index: {}]
  %s5 = inlined_call_operand.hbm [shape: f32[3,4096], index: 5, kind: output, shape index: {}]
  %s6 = sld [smem:[#allocation0]]
  $region57: #{tpu_custom_call.1} parent=0
    _
  %s8 = ssub.s32 1, %s6
  %s9 = scalar_select 0, %s8, %s6
  $region1: #{tpu_custom_call.1} parent=0
    #allocation2 [shape = 'u8[16384]{0}', space=vmem, size = 0x4000, scoped, tag = 'input window, operand 0']
    #allocation3 [shape = 's32[2]{0}', space=sflag, size = 0x8, scoped, tag = 'scoped memory for tpu_custom_call.1']
    #allocation4 [shape = 's32[2]{0}', space=sflag, size = 0x8, scoped, tag = 'scoped memory for tpu_custom_call.1']
    #allocation5 [shape = 'u8[16384]{0}', space=vmem, size = 0x4000, scoped, tag = 'output window, operand 0']
    %10 = vsyncpa [#allocation3], 0
    %s11 = scalar_lea.sflag [#allocation3], 1
    %12 = vsyncpa %s11, 0
    %13 = vsyncpa [#allocation4], 0
    %s14 = scalar_lea.sflag [#allocation4], 1
    %15 = vsyncpa %s14, 0
    loop: start=0, step=1, limit=10
    $region2: #{tpu_custom_call.1} parent=1 // loop_pre_header
      _
    $region3: #{tpu_custom_call.1} parent=1 // loop_header
      %s17 = sphi 0, %s21
      %p18 = scmp.ge.s32.totalorder %s17, 10
      %s27 = sphi 0, %s29
      %s30 = sphi 0, %s27
      %s31 = sphi 0, %s30
      %s47 = sphi 0, %s31
      %s51 = sphi 0, %s51
      %s53 = sphi 0, %s51
      %s54 = sphi 0, %s53
      %s68 = sphi 0, %s54
      %s72 = sphi 0, %s72
      %s74 = sphi 0, %s72
      %s75 = sphi 0, %s74
      %s89 = sphi 0, %s75
      %s93 = sphi 0, %s93
      %s95 = sphi 0, %s93
      %s96 = sphi 0, %s95
      %s110 = sphi 0, %s96
      %s114 = sphi 0, %s114
      %s116 = sphi 0, %s114
      %s117 = sphi 0, %s116
      %s131 = sphi 0, %s117
      %s137 = sphi 0, %s139
      %s140 = sphi 0, %s137
      %s141 = sphi 0, %s140
      %s157 = sphi 0, %s141
    $region4: #{tpu_custom_call.1} parent=1 // loop_header_branch
      %20 = sbr.rel (%p18) target = $region8
    $region5: #{tpu_custom_call.1} parent=1 // loop_body
      %s22 = ssub.s32 %s17, 1
      %s23 = ssub.s32 %s17, 2
      %s24 = sadd.s32 %s17, 1
      %s25 = ssub.s32 %s17, %s24
      %p26 = scmp.eq.s32.totalorder %s25, 0
      %s28 = sadd.s32 %s27, 1
      %s29 = scalar_select %p26, %s27, %s28
      %p32 = pneg %p26
      %p33 = scmp.eq.s32.totalorder %s17, 7
      %p34 = por %p32, %p33
      %p35 = scmp.ne.s32.totalorder %s27, %s30
      %p36 = scmp.eq.s32.totalorder %s17, 0
      %p37 = por %p35, %p36
      %p38 = scmp.ne.s32.totalorder %s27, %s30
      %p39 = scmp.eq.s32.totalorder %s22, 7
      %p40 = por %p38, %p39
      %p41 = scmp.ne.s32.totalorder %s30, %s31
      %p42 = scmp.eq.s32.totalorder %s22, 0
      %p43 = por %p41, %p42
      %p44 = scmp.ne.s32.totalorder %s30, %s31
      %p45 = scmp.eq.s32.totalorder %s23, 7
      %p46 = por %p44, %p45
      %p48 = scmp.ne.s32.totalorder %s31, %s47
      %p49 = scmp.eq.s32.totalorder %s23, 0
      %p50 = por %p48, %p49
      %s52 = sadd.s32 %s51, 1
      %p55 = scmp.eq.s32.totalorder %s17, 7
      %p56 = scmp.ne.s32.totalorder %s51, %s53
      %p57 = scmp.eq.s32.totalorder %s17, 0
      %p58 = por %p56, %p57
      %p59 = scmp.ne.s32.totalorder %s51, %s53
      %p60 = scmp.eq.s32.totalorder %s22, 7
      %p61 = por %p59, %p60
      %p62 = scmp.ne.s32.totalorder %s53, %s54
      %p63 = scmp.eq.s32.totalorder %s22, 0
      %p64 = por %p62, %p63
      %p65 = scmp.ne.s32.totalorder %s53, %s54
      %p66 = scmp.eq.s32.totalorder %s23, 7
      %p67 = por %p65, %p66
      %p69 = scmp.ne.s32.totalorder %s54, %s68
      %p70 = scmp.eq.s32.totalorder %s23, 0
      %p71 = por %p69, %p70
      %s73 = sadd.s32 %s72, 1
      %p76 = scmp.eq.s32.totalorder %s17, 7
      %p77 = scmp.ne.s32.totalorder %s72, %s74
      %p78 = scmp.eq.s32.totalorder %s17, 0
      %p79 = por %p77, %p78
      %p80 = scmp.ne.s32.totalorder %s72, %s74
      %p81 = scmp.eq.s32.totalorder %s22, 7
      %p82 = por %p80, %p81
      %p83 = scmp.ne.s32.totalorder %s74, %s75
      %p84 = scmp.eq.s32.totalorder %s22, 0
      %p85 = por %p83, %p84
      %p86 = scmp.ne.s32.totalorder %s74, %s75
      %p87 = scmp.eq.s32.totalorder %s23, 7
      %p88 = por %p86, %p87
      %p90 = scmp.ne.s32.totalorder %s75, %s89
      %p91 = scmp.eq.s32.totalorder %s23, 0
      %p92 = por %p90, %p91
      %s94 = sadd.s32 %s93, 1
      %p97 = scmp.eq.s32.totalorder %s17, 7
      %p98 = scmp.ne.s32.totalorder %s93, %s95
      %p99 = scmp.eq.s32.totalorder %s17, 0
      %p100 = por %p98, %p99
      %p101 = scmp.ne.s32.totalorder %s93, %s95
      %p102 = scmp.eq.s32.totalorder %s22, 7
      %p103 = por %p101, %p102
      %p104 = scmp.ne.s32.totalorder %s95, %s96
      %p105 = scmp.eq.s32.totalorder %s22, 0
      %p106 = por %p104, %p105
      %p107 = scmp.ne.s32.totalorder %s95, %s96
      %p108 = scmp.eq.s32.totalorder %s23, 7
      %p109 = por %p107, %p108
      %p111 = scmp.ne.s32.totalorder %s96, %s110
      %p112 = scmp.eq.s32.totalorder %s23, 0
      %p113 = por %p111, %p112
      %s115 = sadd.s32 %s114, 1
      %p118 = scmp.eq.s32.totalorder %s17, 7
      %p119 = scmp.ne.s32.totalorder %s114, %s116
      %p120 = scmp.eq.s32.totalorder %s17, 0
      %p121 = por %p119, %p120
      %p122 = scmp.ne.s32.totalorder %s114, %s116
      %p123 = scmp.eq.s32.totalorder %s22, 7
      %p124 = por %p122, %p123
      %p125 = scmp.ne.s32.totalorder %s116, %s117
      %p126 = scmp.eq.s32.totalorder %s22, 0
      %p127 = por %p125, %p126
      %p128 = scmp.ne.s32.totalorder %s116, %s117
      %p129 = scmp.eq.s32.totalorder %s23, 7
      %p130 = por %p128, %p129
      %p132 = scmp.ne.s32.totalorder %s117, %s131
      %p133 = scmp.eq.s32.totalorder %s23, 0
      %p134 = por %p132, %p133
      %s135 = ssub.s32 %s17, %s24
      %p136 = scmp.eq.s32.totalorder %s135, 0
      %s138 = sadd.s32 %s137, 1
      %s139 = scalar_select %p136, %s137, %s138
      %p142 = pneg %p136
      %p143 = scmp.eq.s32.totalorder %s17, 7
      %p144 = por %p142, %p143
      %p145 = scmp.ne.s32.totalorder %s137, %s140
      %p146 = scmp.eq.s32.totalorder %s17, 0
      %p147 = por %p145, %p146
      %p148 = scmp.ne.s32.totalorder %s137, %s140
      %p149 = scmp.eq.s32.totalorder %s22, 7
      %p150 = por %p148, %p149
      %p151 = scmp.ne.s32.totalorder %s140, %s141
      %p152 = scmp.eq.s32.totalorder %s22, 0
      %p153 = por %p151, %p152
      %p154 = scmp.ne.s32.totalorder %s140, %s141
      %p155 = scmp.eq.s32.totalorder %s23, 7
      %p156 = por %p154, %p155
      %p158 = scmp.ne.s32.totalorder %s141, %s157
      %p159 = scmp.eq.s32.totalorder %s23, 0
      %p160 = por %p158, %p159
      %p161 = scmp.le.s32.totalorder 1, %s17
      %p162 = scmp.lt.s32.totalorder %s17, 9
      %p163 = pnand %p161, %p162
      %p164 = pneg %p163
      // Predicated region
      $region9: #{tpu_custom_call.1} parent=5 // pred_check
        _
      $region10: #{tpu_custom_call.1} parent=5 // pred_check_branch
        %166 = sbr.rel (%p163) target = $region12
      $region11: #{tpu_custom_call.1} parent=5 // pred_region
        %s167 = ssub.s32 %s17, 1
        // Predicated region
        $region13: #{tpu_custom_call.1} parent=11 // pred_check
          %p168 = pneg %p64
        $region14: #{tpu_custom_call.1} parent=11 // pred_check_branch
          %170 = sbr.rel (%p168) target = $region16
        $region15: #{tpu_custom_call.1} parent=11 // pred_region
          _
        $region16: #{tpu_custom_call.1} parent=11 // pred_fallthru
          _
        // Predicated region
        $region17: #{tpu_custom_call.1} parent=11 // pred_check
          %p171 = pneg %p85
        $region18: #{tpu_custom_call.1} parent=11 // pred_check_branch
          %173 = sbr.rel (%p171) target = $region20
        $region19: #{tpu_custom_call.1} parent=11 // pred_region
          _
        $region20: #{tpu_custom_call.1} parent=11 // pred_fallthru
          _
        // Predicated region
        $region21: #{tpu_custom_call.1} parent=11 // pred_check
          %p174 = pneg %p106
        $region22: #{tpu_custom_call.1} parent=11 // pred_check_branch
          %176 = sbr.rel (%p174) target = $region24
        $region23: #{tpu_custom_call.1} parent=11 // pred_region
          _
        $region24: #{tpu_custom_call.1} parent=11 // pred_fallthru
          _
        // Predicated region
        $region25: #{tpu_custom_call.1} parent=11 // pred_check
          %p177 = pneg %p127
        $region26: #{tpu_custom_call.1} parent=11 // pred_check_branch
          %179 = sbr.rel (%p177) target = $region28
        $region27: #{tpu_custom_call.1} parent=11 // pred_region
          _
        $region28: #{tpu_custom_call.1} parent=11 // pred_fallthru
          _
      $region12: #{tpu_custom_call.1} parent=5 // pred_fallthru
        _
      %p180 = scmp.lt.s32.totalorder %s17, 8
      // Predicated region
      $region29: #{tpu_custom_call.1} parent=5 // pred_check
        %p181 = pneg %p180
      $region30: #{tpu_custom_call.1} parent=5 // pred_check_branch
        %183 = sbr.rel (%p181) target = $region32
      $region31: #{tpu_custom_call.1} parent=5 // pred_region
        // Predicated region
        $region33: #{tpu_custom_call.1} parent=31 // pred_check
          %p184 = pneg %p37
        $region34: #{tpu_custom_call.1} parent=31 // pred_check_branch
          %186 = sbr.rel (%p184) target = $region36
        $region35: #{tpu_custom_call.1} parent=31 // pred_region
          %s187 = sand.u32 %s27, 1
          %s188 = scalar_lea.sflag [#allocation3], %s187
          %s189 = sand.u32 %s27, 1
          %s190 = smul.addr %s189, 16
          %s191 = scalar_lea.vmem [#allocation2], %s190
          %s192 = smul.u32 4, %s17
          %s194 = ssub.s32 256, 256
          %195 = vsyncadd %s188, %s194
          %s196 = smul.addr %s192, 64
          %s197 = scalar_lea.hbm %s0, %s196
          %s199 = sshll.u32 %s191, 4
          %s200 = int_to_ptr.vmem [resolvable:$true] %s199
          %202 = dma.hbm_to_vmem [thread:$0]  %s197, 256, %s200, %s188
        $region36: #{tpu_custom_call.1} parent=31 // pred_fallthru
          _
      $region32: #{tpu_custom_call.1} parent=5 // pred_fallthru
        _
      %p203 = scmp.le.s32.totalorder 1, %s17
      %p204 = scmp.lt.s32.totalorder %s17, 9
      %p205 = pnand %p203, %p204
      %p206 = pneg %p205
      // Predicated region
      $region37: #{tpu_custom_call.1} parent=5 // pred_check
        _
      $region38: #{tpu_custom_call.1} parent=5 // pred_check_branch
        %208 = sbr.rel (%p205) target = $region40
      $region39: #{tpu_custom_call.1} parent=5 // pred_region
        %s209 = ssub.s32 %s17, 1
        %s210 = sand.u32 %s30, 1
        %s211 = scalar_lea.sflag [#allocation3], %s210
        %s212 = sand.u32 %s30, 1
        %s213 = smul.addr %s212, 16
        %s214 = scalar_lea.vmem [#allocation2], %s213
        // Predicated region
        $region41: #{tpu_custom_call.1} parent=39 // pred_check
          %p215 = pneg %p43
        $region42: #{tpu_custom_call.1} parent=39 // pred_check_branch
          %217 = sbr.rel (%p215) target = $region44
        $region43: #{tpu_custom_call.1} parent=39 // pred_region
          %218 = dma.done %s211, 256
        $region44: #{tpu_custom_call.1} parent=39 // pred_fallthru
          _
        %s219 = sand.u32 %s30, 1
        %s220 = scalar_lea.sflag [#allocation3], %s219
        %s221 = sand.u32 %s30, 1
        %s222 = smul.addr %s221, 16
        %s223 = scalar_lea.vmem [#allocation2], %s222
        %p224 = pneg %p43
        %p225 = pneg %p40
        %p226 = pneg %p64
        %p227 = pneg %p61
        %p228 = pneg %p85
        %p229 = pneg %p82
        %p230 = pneg %p106
        %p231 = pneg %p103
        %p232 = pneg %p127
        %p233 = pneg %p124
        %p234 = pneg %p153
        %p235 = pneg %p150
        %s236 = sand.u32 %s140, 1
        %s237 = scalar_lea.sflag [#allocation4], %s236
        %s238 = sand.u32 %s140, 1
        %s239 = smul.addr %s238, 16
        %s240 = scalar_lea.vmem [#allocation5], %s239
        %s241 = smul.u32 4, %s22
        %s242 = smul.u32 4, %s22
        %v243 = vld [vmem:[%s1] sm:$0xff]
        %v244 = vld [vmem:[%s1 + $0x8] sm:$0xff]
        %v245 = vld [vmem:[%s1 + $0x10] sm:$0xf]
        %v246 = vld [vmem:[%s214] sm:$0xff]
        %v247 = vld [vmem:[%s214 + $0x8] sm:$0xff]
        %v248 = vld [vmem:[%s2] sm:$0xff]
        %v249 = vld [vmem:[%s2 + $0x8] sm:$0xff]
        %v250 = vld [vmem:[%s2 + $0x10] sm:$0xf]
        %252 = vset.pattern.permute.xlu0 0
        %253 = vperm.xlu0 %252, %v248
        %v254 = vpop.permute.xlu0 %253
        %257 = vset.pattern.permute.xlu0 0
        %258 = vperm.xlu0 %257, %v249
        %v259 = vpop.permute.xlu0 %258
        %262 = vset.pattern.permute.xlu0 0
        %263 = vperm.xlu0 %262, %v250
        %v264 = vpop.permute.xlu0 %263
        %v268 = vcombine.high %v246, %v246
        %v269 = vcombine.high %v247, %v247
        %vm270 = vcmask 31744
        %v272 = vsel %vm270, %v243, 0
        %v275 = vsel %vm270, %v244, 0
        %v278 = vsel %vm270, %v245, 0
        %vm280 = vcmask 1043456
        %v281 = vsel %vm280, %v246, 0
        %v283 = vsel %vm280, %v268, 0
        %v285 = vsel %vm280, %v247, 0
        %v287 = vsel %vm280, %v269, 0
        %289 = vmatprep.subr.mxu0 0.0
        %290 = vmatpush1.msra.mxu0 0.0
        %291 = vmatprep.subr.mxu0 0.0
        %292 = vmatpush1.msra.mxu0 0.0
        %293 = vmatprep.subr.mxu0 0.0
        %294 = vmatpush1.msra.mxu0 0.0
        %295 = vmatprep.subr.mxu0 0.0
        %296 = vmatpush1.msra.mxu0 0.0
        %297 = vmatprep.subr.mxu0 0.0
        %298 = vmatpush1.msra.mxu0 0.0
        %299 = vmatprep.subr.mxu0 0.0
        %300 = vmatpush1.msra.mxu0 0.0
        %301 = vmatprep.subr.mxu0 0.0
        %302 = vmatpush1.msra.mxu0 0.0
        %303 = vmatprep.subr.mxu0 0.0
        %304 = vmatpush1.msra.mxu0 0.0
        %305 = vmatprep.subr.mxu0 0.0
        %306 = vmatpush1.msra.mxu0 0.0
        %307 = vmatprep.subr.mxu0 0.0
        %308 = vmatpush1.msra.mxu0 0.0
        %309 = vmatprep.subr.mxu0 0.0
        %310 = vmatpush1.msra.mxu0 0.0
        %311 = vmatprep.subr.mxu0 0.0
        %312 = vmatpush1.msra.mxu0 0.0
        %313 = vmatprep.subr.mxu0 0.0
        %314 = vmatpush1.msra.mxu0 0.0
        %315 = vmatprep.subr.mxu0 0.0
        %316 = vmatpush1.msra.mxu0 0.0
        %317 = vmatprep.subr.mxu0 0.0
        %318 = vmatpush1.msra.mxu0 0.0
        %319 = vmatprep.subr.mxu0 %v283
        %320 = vmatpush1.msra.mxu0 %v281
        %321 = vmatprep.subr.mxu0 0.0
        %322 = vmatpush2.msra.mxu0 0.0
        %323 = vmatprep.subr.mxu0 0.0
        %324 = vmatpush2.msra.mxu0 0.0
        %325 = vmatprep.subr.mxu0 0.0
        %326 = vmatpush2.msra.mxu0 0.0
        %327 = vmatprep.subr.mxu0 0.0
        %328 = vmatpush2.msra.mxu0 0.0
        %329 = vmatprep.subr.mxu0 0.0
        %330 = vmatpush2.msra.mxu0 0.0
        %331 = vmatprep.subr.mxu0 0.0
        %332 = vmatpush2.msra.mxu0 0.0
        %333 = vmatprep.subr.mxu0 0.0
        %334 = vmatpush2.msra.mxu0 0.0
        %335 = vmatprep.subr.mxu0 0.0
        %336 = vmatpush2.msra.mxu0 0.0
        %337 = vmatprep.subr.mxu0 0.0
        %338 = vmatpush2.msra.mxu0 0.0
        %339 = vmatprep.subr.mxu0 0.0
        %340 = vmatpush2.msra.mxu0 0.0
        %341 = vmatprep.subr.mxu0 0.0
        %342 = vmatpush2.msra.mxu0 0.0
        %343 = vmatprep.subr.mxu0 0.0
        %344 = vmatpush2.msra.mxu0 0.0
        %345 = vmatprep.subr.mxu0 0.0
        %346 = vmatpush2.msra.mxu0 0.0
        %347 = vmatprep.subr.mxu0 0.0
        %348 = vmatpush2.msra.mxu0 0.0
        %349 = vmatprep.subr.mxu0 0.0
        %350 = vmatpush2.msra.mxu0 0.0
        %351 = vmatprep.subr.mxu0 0.0
        %352 = vmatpush2.msra.mxu0 0.0
        %353 = vmatprep.mubr.f32.mxu0 0.0
        %354 = vmatmul.mubr.f32.gmra.mxu0 %v272
        %v355 = vpop.f32.mrf.mxu0
        %v356 = vadd.f32 %v254, %v355
        %v357 = vpop.f32.mrf.mxu0
        %v358 = vadd.f32 %v254, %v357
        %359 = vmatprep.mubr.f32.mxu0 0.0
        %360 = vmatmul.mubr.f32.gmra.mxu0 %v275
        %v361 = vpop.f32.mrf.mxu0
        %v362 = vadd.f32 %v259, %v361
        %v363 = vpop.f32.mrf.mxu0
        %v364 = vadd.f32 %v259, %v363
        %365 = vmatprep.mubr.f32.mxu0 0.0
        %366 = vmatmul.mubr.f32.gmra.mxu0 %v278
        %v367 = vpop.f32.mrf.mxu0
        %v368 = vadd.f32 %v264, %v367
        %v369 = vpop.f32.mrf.mxu0
        %v370 = vadd.f32 %v264, %v369
        %371 = vdwg.mxu0
        %372 = vmatprep.subr.mxu0 0.0
        %373 = vmatpush1.msra.mxu0 0.0
        %374 = vmatprep.subr.mxu0 0.0
        %375 = vmatpush1.msra.mxu0 0.0
        %376 = vmatprep.subr.mxu0 0.0
        %377 = vmatpush1.msra.mxu0 0.0
        %378 = vmatprep.subr.mxu0 0.0
        %379 = vmatpush1.msra.mxu0 0.0
        %380 = vmatprep.subr.mxu0 0.0
        %381 = vmatpush1.msra.mxu0 0.0
        %382 = vmatprep.subr.mxu0 0.0
        %383 = vmatpush1.msra.mxu0 0.0
        %384 = vmatprep.subr.mxu0 0.0
        %385 = vmatpush1.msra.mxu0 0.0
        %386 = vmatprep.subr.mxu0 0.0
        %387 = vmatpush1.msra.mxu0 0.0
        %388 = vmatprep.subr.mxu0 0.0
        %389 = vmatpush1.msra.mxu0 0.0
        %390 = vmatprep.subr.mxu0 0.0
        %391 = vmatpush1.msra.mxu0 0.0
        %392 = vmatprep.subr.mxu0 0.0
        %393 = vmatpush1.msra.mxu0 0.0
        %394 = vmatprep.subr.mxu0 0.0
        %395 = vmatpush1.msra.mxu0 0.0
        %396 = vmatprep.subr.mxu0 0.0
        %397 = vmatpush1.msra.mxu0 0.0
        %398 = vmatprep.subr.mxu0 0.0
        %399 = vmatpush1.msra.mxu0 0.0
        %400 = vmatprep.subr.mxu0 0.0
        %401 = vmatpush1.msra.mxu0 0.0
        %402 = vmatprep.subr.mxu0 %v287
        %403 = vmatpush1.msra.mxu0 %v285
        %404 = vmatprep.subr.mxu0 0.0
        %405 = vmatpush2.msra.mxu0 0.0
        %406 = vmatprep.subr.mxu0 0.0
        %407 = vmatpush2.msra.mxu0 0.0
        %408 = vmatprep.subr.mxu0 0.0
        %409 = vmatpush2.msra.mxu0 0.0
        %410 = vmatprep.subr.mxu0 0.0
        %411 = vmatpush2.msra.mxu0 0.0
        %412 = vmatprep.subr.mxu0 0.0
        %413 = vmatpush2.msra.mxu0 0.0
        %414 = vmatprep.subr.mxu0 0.0
        %415 = vmatpush2.msra.mxu0 0.0
        %416 = vmatprep.subr.mxu0 0.0
        %417 = vmatpush2.msra.mxu0 0.0
        %418 = vmatprep.subr.mxu0 0.0
        %419 = vmatpush2.msra.mxu0 0.0
        %420 = vmatprep.subr.mxu0 0.0
        %421 = vmatpush2.msra.mxu0 0.0
        %422 = vmatprep.subr.mxu0 0.0
        %423 = vmatpush2.msra.mxu0 0.0
        %424 = vmatprep.subr.mxu0 0.0
        %425 = vmatpush2.msra.mxu0 0.0
        %426 = vmatprep.subr.mxu0 0.0
        %427 = vmatpush2.msra.mxu0 0.0
        %428 = vmatprep.subr.mxu0 0.0
        %429 = vmatpush2.msra.mxu0 0.0
        %430 = vmatprep.subr.mxu0 0.0
        %431 = vmatpush2.msra.mxu0 0.0
        %432 = vmatprep.subr.mxu0 0.0
        %433 = vmatpush2.msra.mxu0 0.0
        %434 = vmatprep.subr.mxu0 0.0
        %435 = vmatpush2.msra.mxu0 0.0
        %436 = vmatprep.mubr.f32.mxu0 0.0
        %437 = vmatmul.mubr.f32.gmra.mxu0 %v272
        %v438 = vpop.f32.mrf.mxu0
        %v439 = vadd.f32 %v254, %v438
        %v440 = vpop.f32.mrf.mxu0
        %v441 = vadd.f32 %v254, %v440
        %442 = vmatprep.mubr.f32.mxu0 0.0
        %443 = vmatmul.mubr.f32.gmra.mxu0 %v275
        %v444 = vpop.f32.mrf.mxu0
        %v445 = vadd.f32 %v259, %v444
        %v446 = vpop.f32.mrf.mxu0
        %v447 = vadd.f32 %v259, %v446
        %448 = vmatprep.mubr.f32.mxu0 0.0
        %449 = vmatmul.mubr.f32.gmra.mxu0 %v278
        %v450 = vpop.f32.mrf.mxu0
        %v451 = vadd.f32 %v264, %v450
        %v452 = vpop.f32.mrf.mxu0
        %v453 = vadd.f32 %v264, %v452
        %454 = vdwg.mxu0
        %v455 = vmax.f32 %v356, 0.0
        %v456 = vmax.f32 %v358, 0.0
        %v457 = vmax.f32 %v439, 0.0
        %v458 = vmax.f32 %v441, 0.0
        %v459 = vmax.f32 %v362, 0.0
        %v460 = vmax.f32 %v364, 0.0
        %v461 = vmax.f32 %v445, 0.0
        %v462 = vmax.f32 %v447, 0.0
        %v463 = vmax.f32 %v368, 0.0
        %v464 = vmax.f32 %v370, 0.0
        %v465 = vmax.f32 %v451, 0.0
        %v466 = vmax.f32 %v453, 0.0
        %v467 = vld [vmem:[%s3] sm:$0x7]
        %v468 = vld [vmem:[%s4] sm:$0x7]
        %470 = vset.pattern.permute.xlu0 0
        %471 = vperm.xlu0 %470, %v468
        %v472 = vpop.permute.xlu0 %471
        %vm474 = vcmask 162816
        %v476 = vsel %vm474, %v467, 0
        %v479 = vsel %vm280, %v463, 0
        %v482 = vsel %vm280, %v464, 0
        %v485 = vsel %vm280, %v465, 0
        %v488 = vsel %vm280, %v466, 0
        %490 = vmatprep.subr.mxu0 0.0
        %491 = vmatpush1.msra.mxu0 0.0
        %492 = vmatprep.subr.mxu0 0.0
        %493 = vmatpush1.msra.mxu0 0.0
        %494 = vmatprep.subr.mxu0 0.0
        %495 = vmatpush1.msra.mxu0 0.0
        %496 = vmatprep.subr.mxu0 0.0
        %497 = vmatpush1.msra.mxu0 0.0
        %498 = vmatprep.subr.mxu0 0.0
        %499 = vmatpush1.msra.mxu0 0.0
        %500 = vmatprep.subr.mxu0 0.0
        %501 = vmatpush1.msra.mxu0 0.0
        %502 = vmatprep.subr.mxu0 0.0
        %503 = vmatpush1.msra.mxu0 0.0
        %504 = vmatprep.subr.mxu0 0.0
        %505 = vmatpush1.msra.mxu0 0.0
        %506 = vmatprep.subr.mxu0 0.0
        %507 = vmatpush1.msra.mxu0 0.0
        %508 = vmatprep.subr.mxu0 0.0
        %509 = vmatpush1.msra.mxu0 0.0
        %510 = vmatprep.subr.mxu0 0.0
        %511 = vmatpush1.msra.mxu0 0.0
        %512 = vmatprep.subr.mxu0 0.0
        %513 = vmatpush1.msra.mxu0 0.0
        %514 = vmatprep.subr.mxu0 0.0
        %515 = vmatpush1.msra.mxu0 0.0
        %516 = vmatprep.subr.mxu0 %v482
        %517 = vmatpush1.msra.mxu0 %v479
        %518 = vmatprep.subr.mxu0 %v460
        %519 = vmatpush1.msra.mxu0 %v459
        %520 = vmatprep.subr.mxu0 %v456
        %521 = vmatpush1.msra.mxu0 %v455
        %522 = vmatprep.subr.mxu0 0.0
        %523 = vmatpush2.msra.mxu0 0.0
        %524 = vmatprep.subr.mxu0 0.0
        %525 = vmatpush2.msra.mxu0 0.0
        %526 = vmatprep.subr.mxu0 0.0
        %527 = vmatpush2.msra.mxu0 0.0
        %528 = vmatprep.subr.mxu0 0.0
        %529 = vmatpush2.msra.mxu0 0.0
        %530 = vmatprep.subr.mxu0 0.0
        %531 = vmatpush2.msra.mxu0 0.0
        %532 = vmatprep.subr.mxu0 0.0
        %533 = vmatpush2.msra.mxu0 0.0
        %534 = vmatprep.subr.mxu0 0.0
        %535 = vmatpush2.msra.mxu0 0.0
        %536 = vmatprep.subr.mxu0 0.0
        %537 = vmatpush2.msra.mxu0 0.0
        %538 = vmatprep.subr.mxu0 0.0
        %539 = vmatpush2.msra.mxu0 0.0
        %540 = vmatprep.subr.mxu0 0.0
        %541 = vmatpush2.msra.mxu0 0.0
        %542 = vmatprep.subr.mxu0 0.0
        %543 = vmatpush2.msra.mxu0 0.0
        %544 = vmatprep.subr.mxu0 0.0
        %545 = vmatpush2.msra.mxu0 0.0
        %546 = vmatprep.subr.mxu0 0.0
        %547 = vmatpush2.msra.mxu0 0.0
        %548 = vmatprep.subr.mxu0 0.0
        %549 = vmatpush2.msra.mxu0 0.0
        %550 = vmatprep.subr.mxu0 0.0
        %551 = vmatpush2.msra.mxu0 0.0
        %552 = vmatprep.subr.mxu0 0.0
        %553 = vmatpush2.msra.mxu0 0.0
        %554 = vmatprep.mubr.f32.mxu0 0.0
        %555 = vmatmul.mubr.f32.gmra.mxu0 %v476
        %v556 = vpop.f32.mrf.mxu0
        %v557 = vadd.f32 %v472, %v556
        %v558 = vpop.f32.mrf.mxu0
        %v559 = vadd.f32 %v472, %v558
        %560 = vdwg.mxu0
        %561 = vmatprep.subr.mxu0 0.0
        %562 = vmatpush1.msra.mxu0 0.0
        %563 = vmatprep.subr.mxu0 0.0
        %564 = vmatpush1.msra.mxu0 0.0
        %565 = vmatprep.subr.mxu0 0.0
        %566 = vmatpush1.msra.mxu0 0.0
        %567 = vmatprep.subr.mxu0 0.0
        %568 = vmatpush1.msra.mxu0 0.0
        %569 = vmatprep.subr.mxu0 0.0
        %570 = vmatpush1.msra.mxu0 0.0
        %571 = vmatprep.subr.mxu0 0.0
        %572 = vmatpush1.msra.mxu0 0.0
        %573 = vmatprep.subr.mxu0 0.0
        %574 = vmatpush1.msra.mxu0 0.0
        %575 = vmatprep.subr.mxu0 0.0
        %576 = vmatpush1.msra.mxu0 0.0
        %577 = vmatprep.subr.mxu0 0.0
        %578 = vmatpush1.msra.mxu0 0.0
        %579 = vmatprep.subr.mxu0 0.0
        %580 = vmatpush1.msra.mxu0 0.0
        %581 = vmatprep.subr.mxu0 0.0
        %582 = vmatpush1.msra.mxu0 0.0
        %583 = vmatprep.subr.mxu0 0.0
        %584 = vmatpush1.msra.mxu0 0.0
        %585 = vmatprep.subr.mxu0 0.0
        %586 = vmatpush1.msra.mxu0 0.0
        %587 = vmatprep.subr.mxu0 %v488
        %588 = vmatpush1.msra.mxu0 %v485
        %589 = vmatprep.subr.mxu0 %v462
        %590 = vmatpush1.msra.mxu0 %v461
        %591 = vmatprep.subr.mxu0 %v458
        %592 = vmatpush1.msra.mxu0 %v457
        %593 = vmatprep.subr.mxu0 0.0
        %594 = vmatpush2.msra.mxu0 0.0
        %595 = vmatprep.subr.mxu0 0.0
        %596 = vmatpush2.msra.mxu0 0.0
        %597 = vmatprep.subr.mxu0 0.0
        %598 = vmatpush2.msra.mxu0 0.0
        %599 = vmatprep.subr.mxu0 0.0
        %600 = vmatpush2.msra.mxu0 0.0
        %601 = vmatprep.subr.mxu0 0.0
        %602 = vmatpush2.msra.mxu0 0.0
        %603 = vmatprep.subr.mxu0 0.0
        %604 = vmatpush2.msra.mxu0 0.0
        %605 = vmatprep.subr.mxu0 0.0
        %606 = vmatpush2.msra.mxu0 0.0
        %607 = vmatprep.subr.mxu0 0.0
        %608 = vmatpush2.msra.mxu0 0.0
        %609 = vmatprep.subr.mxu0 0.0
        %610 = vmatpush2.msra.mxu0 0.0
        %611 = vmatprep.subr.mxu0 0.0
        %612 = vmatpush2.msra.mxu0 0.0
        %613 = vmatprep.subr.mxu0 0.0
        %614 = vmatpush2.msra.mxu0 0.0
        %615 = vmatprep.subr.mxu0 0.0
        %616 = vmatpush2.msra.mxu0 0.0
        %617 = vmatprep.subr.mxu0 0.0
        %618 = vmatpush2.msra.mxu0 0.0
        %619 = vmatprep.subr.mxu0 0.0
        %620 = vmatpush2.msra.mxu0 0.0
        %621 = vmatprep.subr.mxu0 0.0
        %622 = vmatpush2.msra.mxu0 0.0
        %623 = vmatprep.subr.mxu0 0.0
        %624 = vmatpush2.msra.mxu0 0.0
        %625 = vmatprep.mubr.f32.mxu0 0.0
        %626 = vmatmul.mubr.f32.gmra.mxu0 %v476
        %v627 = vpop.f32.mrf.mxu0
        %v628 = vadd.f32 %v472, %v627
        %v629 = vpop.f32.mrf.mxu0
        %v630 = vadd.f32 %v472, %v629
        %631 = vdwg.mxu0
        %v636 = vcombine.low %v557, %v559
        %v637 = vcombine.low %v628, %v630
        %640 = vst [vmem:[%s240] sm:$0x77] %v636
        %641 = vst [vmem:[%s240 + $0x8] sm:$0x77] %v637
        %s642 = sand.u32 %s140, 1
        %s643 = scalar_lea.sflag [#allocation4], %s642
        %s644 = sand.u32 %s140, 1
        %s645 = smul.addr %s644, 16
        %s646 = scalar_lea.vmem [#allocation5], %s645
        // Predicated region
        $region45: #{tpu_custom_call.1} parent=39 // pred_check
          %p647 = pneg %p150
        $region46: #{tpu_custom_call.1} parent=39 // pred_check_branch
          %649 = sbr.rel (%p647) target = $region48
        $region47: #{tpu_custom_call.1} parent=39 // pred_region
          %s650 = smul.u32 4, %s22
          %s652 = ssub.s32 256, 256
          %653 = vsyncadd %s643, %s652
          %s654 = smul.addr %s650, 64
          %s655 = scalar_lea.hbm %s5, %s654
          %s657 = sshll.u32 %s646, 4
          %s658 = int_to_ptr.vmem [resolvable:$true] %s657
          %660 = dma.vmem_to_hbm [thread:$0]  %s658, 256, %s655, %s643
        $region48: #{tpu_custom_call.1} parent=39 // pred_fallthru
          _
      $region40: #{tpu_custom_call.1} parent=5 // pred_fallthru
        _
      %p661 = scmp.le.s32.totalorder 2, %s17
      // Predicated region
      $region49: #{tpu_custom_call.1} parent=5 // pred_check
        %p662 = pneg %p661
      $region50: #{tpu_custom_call.1} parent=5 // pred_check_branch
        %664 = sbr.rel (%p662) target = $region52
      $region51: #{tpu_custom_call.1} parent=5 // pred_region
        %s665 = ssub.s32 %s17, 2
        // Predicated region
        $region53: #{tpu_custom_call.1} parent=51 // pred_check
          %p666 = pneg %p156
        $region54: #{tpu_custom_call.1} parent=51 // pred_check_branch
          %668 = sbr.rel (%p666) target = $region56
        $region55: #{tpu_custom_call.1} parent=51 // pred_region
          %s669 = sand.u32 %s141, 1
          %s670 = scalar_lea.sflag [#allocation4], %s669
          %s671 = sand.u32 %s141, 1
          %s672 = smul.addr %s671, 16
          %s673 = scalar_lea.vmem [#allocation5], %s672
          %674 = dma.done %s670, 256
        $region56: #{tpu_custom_call.1} parent=51 // pred_fallthru
          _
      $region52: #{tpu_custom_call.1} parent=5 // pred_fallthru
        _
    $region6: #{tpu_custom_call.1} parent=1 // loop_footer
      %s21 = sadd.s32 1, %s17
    $region7: #{tpu_custom_call.1} parent=1 // loop_footer_branch
      %16 = sbr.rel target = $region3
    $region8: #{tpu_custom_call.1} parent=1 // loop_exit
      _
    %675 = vsyncpa [#allocation3], 1
    %s676 = scalar_lea.sflag [#allocation3], 1
    %677 = vsyncpa %s676, 1
    %678 = vsyncpa [#allocation4], 1
    %s679 = scalar_lea.sflag [#allocation4], 1
    %680 = vsyncpa %s679, 1

</llo_original>
